<compile_context>
chip_gen: v7x
topology: tpu7x:2x2x1
jax: 0.10.0
libtpu: 0.0.40
codegen_flags: <defaults>
</compile_context>

<pallas_src>
import jax
import jax.numpy as jnp
from jax.experimental import pallas as pl
from jax.experimental.pallas import tpu as pltpu

SPARSITY_THRESHOLD = 0.1

# Inner model dims (Linear(32->64) -> ReLU -> Linear(64->16)).
IN_DIM = 32
HIDDEN = 64
OUT_DIM = 16

SUBLANE = 8      # f32 sublane granularity for the batch (second-minor) dim
TB_MAX = 512     # max batch rows per grid tile

# Set to jnp.bfloat16 on v6e/v7x for ~2x MXU throughput and half the
# activation/weight DMA bytes (round tb to 16 and loosen the check tolerance
# if you do).  f32 default keeps the demo exact on all generations.
COMPUTE_DTYPE = jnp.float32


def _round_up(x, m):
    return (x + m - 1) // m * m


def _pick_tb(batch):
    """Batch rows per grid step.

    Large tiles amortize per-step overhead; but keep >= 2 balanced steps when
    the batch allows it so dimension_semantics=("parallel",) can actually
    shard the batch across both TensorCores on v7x (harmless on v5e/v6e).
    """
    if batch <= SUBLANE:
        return SUBLANE
    tb = _round_up(pl.cdiv(batch, 2), SUBLANE)
    return min(tb, TB_MAX)


# --------------------------------------------------------------------------
# Fused pruned-MLP kernel:
#   mask(W1), mask(W2) on the VPU  (re-applied every forward, per the spec)
#   (tb, IN) @ (IN, HID) -> +b1 -> ReLU -> @ (HID, OUT) -> +b2
# Weights / biases use constant index_maps so they stay VMEM-resident across
# the batch grid; only activations and outputs stream HBM <-> VMEM.
# --------------------------------------------------------------------------
def _pruned_mlp_kernel(x_ref, w1_ref, b1_ref, w2_ref, b2_ref, o_ref):
    # Re-apply the magnitude mask (|w| > threshold) -- idempotent, matches the
    # PyTorch wrapper's per-forward param.data.mul_(mask).  A few compare /
    # selects on small VMEM-resident tiles: effectively free VALU filler.
    w1 = w1_ref[...]
    w1 = jnp.where(jnp.abs(w1) > SPARSITY_THRESHOLD, w1, jnp.zeros_like(w1))
    w2 = w2_ref[...]
    w2 = jnp.where(jnp.abs(w2) > SPARSITY_THRESHOLD, w2, jnp.zeros_like(w2))

    h = jnp.dot(x_ref[...], w1, preferred_element_type=jnp.float32) + b1_ref[...]
    h = jnp.maximum(h, 0.0).astype(w2.dtype)
    o_ref[...] = (
        jnp.dot(h, w2, preferred_element_type=jnp.float32) + b2_ref[...]
    ).astype(o_ref.dtype)


@jax.jit
def pruned_mlp_forward(x, w1_t, b1, w2_t, b2):
    """x: (B, IN), w1_t: (IN, HIDDEN), b1: (1, HIDDEN) or (HIDDEN,),
    w2_t: (HIDDEN, OUT), b2: (1, OUT) or (OUT,).  Returns (B, OUT) f32."""
    B, in_dim = x.shape
    hidden = w1_t.shape[1]
    out_dim = w2_t.shape[1]

    tb = _pick_tb(B)
    b_p = _round_up(B, tb)

    x_c = x.astype(COMPUTE_DTYPE)
    if b_p != B:
        # Padded batch rows (zero inputs) compute relu(b1)@W2 + b2, i.e.
        # nonzero garbage -- that's fine, they are sliced off below.
        x_c = jnp.zeros((b_p, in_dim), COMPUTE_DTYPE).at[:B].set(x_c)

    w1_c = w1_t.astype(COMPUTE_DTYPE)
    w2_c = w2_t.astype(COMPUTE_DTYPE)
    b1_c = b1.reshape(1, hidden).astype(jnp.float32)
    b2_c = b2.reshape(1, out_dim).astype(jnp.float32)

    grid = (b_p // tb,)
    out = pl.pallas_call(
        _pruned_mlp_kernel,
        out_shape=jax.ShapeDtypeStruct((b_p, out_dim), jnp.float32),
        grid_spec=pl.GridSpec(
            grid=grid,
            in_specs=[
                # Activations stream over the batch grid; feature dim is the
                # full array extent (no lane padding -> 4x fewer read bytes).
                pl.BlockSpec((tb, in_dim), lambda i: (i, 0)),
                pl.BlockSpec((in_dim, hidden), lambda i: (0, 0)),   # W1 resident
                pl.BlockSpec((1, hidden), lambda i: (0, 0)),        # b1 resident
                pl.BlockSpec((hidden, out_dim), lambda i: (0, 0)),  # W2 resident
                pl.BlockSpec((1, out_dim), lambda i: (0, 0)),       # b2 resident
            ],
            # Full-extent (16-wide) output block: masked stores, but 8x fewer
            # HBM write bytes than a 128-lane-padded slab + external slice.
            out_specs=pl.BlockSpec((tb, out_dim), lambda i: (i, 0)),
        ),
        compiler_params=pltpu.CompilerParams(
            dimension_semantics=("parallel",),  # megacore sharding on v7x
        ),
    )(x_c, w1_c, b1_c, w2_c, b2_c)

    return out[:B] if b_p != B else out


def reference_forward(x, w1_t, b1, w2_t, b2):
    """Pure-JAX reference of the pruned forward pass (f32 throughout)."""
    w1m = jnp.where(jnp.abs(w1_t) > SPARSITY_THRESHOLD, w1_t, 0.0)
    w2m = jnp.where(jnp.abs(w2_t) > SPARSITY_THRESHOLD, w2_t, 0.0)
    h = jnp.maximum(x @ w1m + b1.reshape(1, -1), 0.0)
    return h @ w2m + b2.reshape(1, -1)


# TODO(synk): the PyTorch wrapper is model-agnostic (iterates named_parameters);
# this kernel specializes to the 2-layer MLP.  get_sparsity() is host-side
# bookkeeping and is not part of the forward pass.

if __name__ == "__main__":
    key = jax.random.PRNGKey(0)
    kx, k1, kb1, k2, kb2 = jax.random.split(key, 5)

    # Deterministic "checkpoint": uniform weights in [-0.3, 0.3] so a
    # meaningful fraction falls under the 0.1 pruning threshold.
    BATCH = 64  # small, but still yields a 2-step batch grid (tb=32)
    x = jax.random.normal(kx, (BATCH, IN_DIM), dtype=jnp.float32)
    w1_t = jax.random.uniform(k1, (IN_DIM, HIDDEN), minval=-0.3, maxval=0.3,
                              dtype=jnp.float32)
    b1 = jax.random.uniform(kb1, (1, HIDDEN), minval=-0.1, maxval=0.1,
                            dtype=jnp.float32)
    w2_t = jax.random.uniform(k2, (HIDDEN, OUT_DIM), minval=-0.3, maxval=0.3,
                              dtype=jnp.float32)
    b2 = jax.random.uniform(kb2, (1, OUT_DIM), minval=-0.1, maxval=0.1,
                            dtype=jnp.float32)

    out = pruned_mlp_forward(x, w1_t, b1, w2_t, b2)
    out = jax.block_until_ready(out)

    ref = reference_forward(x, w1_t, b1, w2_t, b2)
    assert out.shape == (BATCH, OUT_DIM), out.shape
    assert jnp.allclose(out, ref, atol=1e-5, rtol=1e-5), "mismatch vs reference"

    print("KERNEL_OK")
</pallas_src>

<mosaic_0001>
module attributes {stable_mosaic.version = 11 : i64} {
  func.func @_pruned_mlp_kernel(%arg0: i32, %arg1: memref<32x32xf32, #tpu.memory_space<vmem>>, %arg2: memref<32x64xf32, #tpu.memory_space<vmem>>, %arg3: memref<1x64xf32, #tpu.memory_space<vmem>>, %arg4: memref<64x16xf32, #tpu.memory_space<vmem>>, %arg5: memref<1x16xf32, #tpu.memory_space<vmem>>, %arg6: memref<32x16xf32, #tpu.memory_space<vmem>>) attributes {dimension_semantics = [#tpu.dimension_semantics<parallel>], iteration_bounds = array<i64: 2>, scalar_prefetch = 0 : i64, scratch_operands = 0 : i64, tpu.core_type = #tpu.core_type<tc>, window_params = [{transform_indices = @transform_0, window_bounds = array<i64: 32, 32>}, {pipeline_mode = #tpu.pipeline_mode<synchronous>, transform_indices = @transform_1, window_bounds = array<i64: 32, 64>}, {pipeline_mode = #tpu.pipeline_mode<synchronous>, transform_indices = @transform_2, window_bounds = array<i64: 1, 64>}, {pipeline_mode = #tpu.pipeline_mode<synchronous>, transform_indices = @transform_3, window_bounds = array<i64: 64, 16>}, {pipeline_mode = #tpu.pipeline_mode<synchronous>, transform_indices = @transform_4, window_bounds = array<i64: 1, 16>}, {transform_indices = @transform_5, window_bounds = array<i64: 32, 16>}]} {
    %c0 = arith.constant 0 : index
    %c0_0 = arith.constant 0 : index
    %0 = vector.load %arg2[%c0, %c0_0] : memref<32x64xf32, #tpu.memory_space<vmem>>, vector<32x64xf32>
    %1 = math.absf %0 : vector<32x64xf32>
    %cst = arith.constant 1.000000e-01 : f32
    %2 = vector.broadcast %cst : f32 to vector<32x64xf32>
    %3 = arith.cmpf ogt, %1, %2 : vector<32x64xf32>
    %cst_1 = arith.constant 0.000000e+00 : f32
    %4 = vector.broadcast %cst_1 : f32 to vector<32x64xf32>
    %5 = arith.select %3, %0, %4 : vector<32x64xi1>, vector<32x64xf32>
    %c0_2 = arith.constant 0 : index
    %c0_3 = arith.constant 0 : index
    %6 = vector.load %arg4[%c0_2, %c0_3] : memref<64x16xf32, #tpu.memory_space<vmem>>, vector<64x16xf32>
    %7 = math.absf %6 : vector<64x16xf32>
    %cst_4 = arith.constant 1.000000e-01 : f32
    %8 = vector.broadcast %cst_4 : f32 to vector<64x16xf32>
    %9 = arith.cmpf ogt, %7, %8 : vector<64x16xf32>
    %cst_5 = arith.constant 0.000000e+00 : f32
    %10 = vector.broadcast %cst_5 : f32 to vector<64x16xf32>
    %11 = arith.select %9, %6, %10 : vector<64x16xi1>, vector<64x16xf32>
    %c0_6 = arith.constant 0 : index
    %c0_7 = arith.constant 0 : index
    %12 = vector.load %arg1[%c0_6, %c0_7] : memref<32x32xf32, #tpu.memory_space<vmem>>, vector<32x32xf32>
    %cst_8 = arith.constant dense<0.000000e+00> : vector<32x64xf32>
    %13 = tpu.matmul %12, %5, %cst_8 {dimension_numbers = #tpu.dot_dimension_numbers<[1], [0], [0], [1], [0, 0, 1, 1], [], []>} : vector<32x32xf32>, vector<32x64xf32>, vector<32x64xf32> -> vector<32x64xf32>
    %c0_9 = arith.constant 0 : index
    %c0_10 = arith.constant 0 : index
    %14 = vector.load %arg3[%c0_9, %c0_10] : memref<1x64xf32, #tpu.memory_space<vmem>>, vector<1x64xf32>
    %15 = vector.broadcast %14 : vector<1x64xf32> to vector<32x64xf32>
    %16 = arith.addf %13, %15 : vector<32x64xf32>
    %cst_11 = arith.constant 0.000000e+00 : f32
    %17 = vector.broadcast %cst_11 : f32 to vector<32x64xf32>
    %18 = arith.maximumf %16, %17 : vector<32x64xf32>
    %cst_12 = arith.constant dense<0.000000e+00> : vector<32x16xf32>
    %19 = tpu.matmul %18, %11, %cst_12 {dimension_numbers = #tpu.dot_dimension_numbers<[1], [0], [0], [1], [0, 0, 1, 1], [], []>} : vector<32x64xf32>, vector<64x16xf32>, vector<32x16xf32> -> vector<32x16xf32>
    %c0_13 = arith.constant 0 : index
    %c0_14 = arith.constant 0 : index
    %20 = vector.load %arg5[%c0_13, %c0_14] : memref<1x16xf32, #tpu.memory_space<vmem>>, vector<1x16xf32>
    %21 = vector.broadcast %20 : vector<1x16xf32> to vector<32x16xf32>
    %22 = arith.addf %19, %21 : vector<32x16xf32>
    %c0_15 = arith.constant 0 : index
    %c0_16 = arith.constant 0 : index
    %23 = vector.load %arg6[%c0_15, %c0_16] : memref<32x16xf32, #tpu.memory_space<vmem>>, vector<32x16xf32>
    tpu.vector_store %arg6[%c0_15, %c0_16], %22 {strides = array<i32>} : memref<32x16xf32, #tpu.memory_space<vmem>>, vector<32x16xf32>,
    return
  }
  func.func @transform_0(%arg0: i32) -> (i32, i32) {
    %c0_i32 = arith.constant 0 : i32
    %c0_i32_0 = arith.constant 0 : i32
    return %arg0, %c0_i32 : i32, i32
  }
  func.func @transform_1(%arg0: i32) -> (i32, i32) {
    %c0_i32 = arith.constant 0 : i32
    %c0_i32_0 = arith.constant 0 : i32
    %c0_i32_1 = arith.constant 0 : i32
    return %c0_i32, %c0_i32_0 : i32, i32
  }
  func.func @transform_2(%arg0: i32) -> (i32, i32) {
    %c0_i32 = arith.constant 0 : i32
    %c0_i32_0 = arith.constant 0 : i32
    %c0_i32_1 = arith.constant 0 : i32
    return %c0_i32, %c0_i32_0 : i32, i32
  }
  func.func @transform_3(%arg0: i32) -> (i32, i32) {
    %c0_i32 = arith.constant 0 : i32
    %c0_i32_0 = arith.constant 0 : i32
    %c0_i32_1 = arith.constant 0 : i32
    return %c0_i32, %c0_i32_0 : i32, i32
  }
  func.func @transform_4(%arg0: i32) -> (i32, i32) {
    %c0_i32 = arith.constant 0 : i32
    %c0_i32_0 = arith.constant 0 : i32
    %c0_i32_1 = arith.constant 0 : i32
    return %c0_i32, %c0_i32_0 : i32, i32
  }
  func.func @transform_5(%arg0: i32) -> (i32, i32) {
    %c0_i32 = arith.constant 0 : i32
    %c0_i32_0 = arith.constant 0 : i32
    return %arg0, %c0_i32 : i32, i32
  }
}

</mosaic_0001>

<llo_original>
// kernel: pruned_mlp_forward.1
$region0: #{pruned_mlp_forward.1}
  #allocation0 [shape = 'u32[]', space=smem, size = 0x4, offset = 0x4, fixed_abs, tag = 'smem constant byte address 0x4 - core index']
  #allocation1 [shape = 'u32[144,128]{1,0:T(1,128)}', space=vmem, size = 0x12000, scoped, tag = 'internal scratch']
  %s0 = inlined_call_operand.vmem [shape: f32[64,32], index: 0, kind: input, shape index: {}]
  %s1 = inlined_call_operand.vmem [shape: f32[32,64], index: 1, kind: input, shape index: {}]
  %s2 = inlined_call_operand.vmem [shape: f32[1,64], index: 2, kind: input, shape index: {}]
  %s3 = inlined_call_operand.vmem [shape: f32[64,16], index: 3, kind: input, shape index: {}]
  %s4 = inlined_call_operand.vmem [shape: f32[1,16], index: 4, kind: input, shape index: {}]
  %s5 = inlined_call_operand.vmem [shape: f32[64,16], index: 5, kind: output, shape index: {}]
  %s6 = sld [smem:[#allocation0]]
  $region53: #{pruned_mlp_forward.1} parent=0
    _
  %s8 = ssub.s32 1, %s6
  %s9 = scalar_select 0, %s8, %s6
  loop: start=0, step=1, limit=4
  $region2: #{pruned_mlp_forward.1} parent=0 // loop_pre_header
    _
  $region3: #{pruned_mlp_forward.1} parent=0 // loop_header
    %s11 = sphi 0, %s15
    %p12 = scmp.ge.s32.totalorder %s11, 4
    %s21 = sphi 0, %s23
    %s24 = sphi 0, %s21
    %s25 = sphi 0, %s24
    %s41 = sphi 0, %s25
    %s45 = sphi 0, %s45
    %s47 = sphi 0, %s45
    %s48 = sphi 0, %s47
    %s62 = sphi 0, %s48
    %s66 = sphi 0, %s66
    %s68 = sphi 0, %s66
    %s69 = sphi 0, %s68
    %s83 = sphi 0, %s69
    %s87 = sphi 0, %s87
    %s89 = sphi 0, %s87
    %s90 = sphi 0, %s89
    %s104 = sphi 0, %s90
    %s108 = sphi 0, %s108
    %s110 = sphi 0, %s108
    %s111 = sphi 0, %s110
    %s125 = sphi 0, %s111
    %s131 = sphi 0, %s133
    %s134 = sphi 0, %s131
    %s135 = sphi 0, %s134
    %s151 = sphi 0, %s135
  $region4: #{pruned_mlp_forward.1} parent=0 // loop_header_branch
    %14 = sbr.rel (%p12) target = $region8
  $region5: #{pruned_mlp_forward.1} parent=0 // loop_body
    %s16 = ssub.s32 %s11, 1
    %s17 = ssub.s32 %s11, 2
    %s18 = sadd.s32 %s11, 1
    %s19 = ssub.s32 %s11, %s18
    %p20 = scmp.eq.s32.totalorder %s19, 0
    %s22 = sadd.s32 %s21, 1
    %s23 = scalar_select %p20, %s21, %s22
    %p26 = pneg %p20
    %p27 = scmp.eq.s32.totalorder %s11, 1
    %p28 = por %p26, %p27
    %p29 = scmp.ne.s32.totalorder %s21, %s24
    %p30 = scmp.eq.s32.totalorder %s11, 0
    %p31 = por %p29, %p30
    %p32 = scmp.ne.s32.totalorder %s21, %s24
    %p33 = scmp.eq.s32.totalorder %s16, 1
    %p34 = por %p32, %p33
    %p35 = scmp.ne.s32.totalorder %s24, %s25
    %p36 = scmp.eq.s32.totalorder %s16, 0
    %p37 = por %p35, %p36
    %p38 = scmp.ne.s32.totalorder %s24, %s25
    %p39 = scmp.eq.s32.totalorder %s17, 1
    %p40 = por %p38, %p39
    %p42 = scmp.ne.s32.totalorder %s25, %s41
    %p43 = scmp.eq.s32.totalorder %s17, 0
    %p44 = por %p42, %p43
    %s46 = sadd.s32 %s45, 1
    %p49 = scmp.eq.s32.totalorder %s11, 1
    %p50 = scmp.ne.s32.totalorder %s45, %s47
    %p51 = scmp.eq.s32.totalorder %s11, 0
    %p52 = por %p50, %p51
    %p53 = scmp.ne.s32.totalorder %s45, %s47
    %p54 = scmp.eq.s32.totalorder %s16, 1
    %p55 = por %p53, %p54
    %p56 = scmp.ne.s32.totalorder %s47, %s48
    %p57 = scmp.eq.s32.totalorder %s16, 0
    %p58 = por %p56, %p57
    %p59 = scmp.ne.s32.totalorder %s47, %s48
    %p60 = scmp.eq.s32.totalorder %s17, 1
    %p61 = por %p59, %p60
    %p63 = scmp.ne.s32.totalorder %s48, %s62
    %p64 = scmp.eq.s32.totalorder %s17, 0
    %p65 = por %p63, %p64
    %s67 = sadd.s32 %s66, 1
    %p70 = scmp.eq.s32.totalorder %s11, 1
    %p71 = scmp.ne.s32.totalorder %s66, %s68
    %p72 = scmp.eq.s32.totalorder %s11, 0
    %p73 = por %p71, %p72
    %p74 = scmp.ne.s32.totalorder %s66, %s68
    %p75 = scmp.eq.s32.totalorder %s16, 1
    %p76 = por %p74, %p75
    %p77 = scmp.ne.s32.totalorder %s68, %s69
    %p78 = scmp.eq.s32.totalorder %s16, 0
    %p79 = por %p77, %p78
    %p80 = scmp.ne.s32.totalorder %s68, %s69
    %p81 = scmp.eq.s32.totalorder %s17, 1
    %p82 = por %p80, %p81
    %p84 = scmp.ne.s32.totalorder %s69, %s83
    %p85 = scmp.eq.s32.totalorder %s17, 0
    %p86 = por %p84, %p85
    %s88 = sadd.s32 %s87, 1
    %p91 = scmp.eq.s32.totalorder %s11, 1
    %p92 = scmp.ne.s32.totalorder %s87, %s89
    %p93 = scmp.eq.s32.totalorder %s11, 0
    %p94 = por %p92, %p93
    %p95 = scmp.ne.s32.totalorder %s87, %s89
    %p96 = scmp.eq.s32.totalorder %s16, 1
    %p97 = por %p95, %p96
    %p98 = scmp.ne.s32.totalorder %s89, %s90
    %p99 = scmp.eq.s32.totalorder %s16, 0
    %p100 = por %p98, %p99
    %p101 = scmp.ne.s32.totalorder %s89, %s90
    %p102 = scmp.eq.s32.totalorder %s17, 1
    %p103 = por %p101, %p102
    %p105 = scmp.ne.s32.totalorder %s90, %s104
    %p106 = scmp.eq.s32.totalorder %s17, 0
    %p107 = por %p105, %p106
    %s109 = sadd.s32 %s108, 1
    %p112 = scmp.eq.s32.totalorder %s11, 1
    %p113 = scmp.ne.s32.totalorder %s108, %s110
    %p114 = scmp.eq.s32.totalorder %s11, 0
    %p115 = por %p113, %p114
    %p116 = scmp.ne.s32.totalorder %s108, %s110
    %p117 = scmp.eq.s32.totalorder %s16, 1
    %p118 = por %p116, %p117
    %p119 = scmp.ne.s32.totalorder %s110, %s111
    %p120 = scmp.eq.s32.totalorder %s16, 0
    %p121 = por %p119, %p120
    %p122 = scmp.ne.s32.totalorder %s110, %s111
    %p123 = scmp.eq.s32.totalorder %s17, 1
    %p124 = por %p122, %p123
    %p126 = scmp.ne.s32.totalorder %s111, %s125
    %p127 = scmp.eq.s32.totalorder %s17, 0
    %p128 = por %p126, %p127
    %s129 = ssub.s32 %s11, %s18
    %p130 = scmp.eq.s32.totalorder %s129, 0
    %s132 = sadd.s32 %s131, 1
    %s133 = scalar_select %p130, %s131, %s132
    %p136 = pneg %p130
    %p137 = scmp.eq.s32.totalorder %s11, 1
    %p138 = por %p136, %p137
    %p139 = scmp.ne.s32.totalorder %s131, %s134
    %p140 = scmp.eq.s32.totalorder %s11, 0
    %p141 = por %p139, %p140
    %p142 = scmp.ne.s32.totalorder %s131, %s134
    %p143 = scmp.eq.s32.totalorder %s16, 1
    %p144 = por %p142, %p143
    %p145 = scmp.ne.s32.totalorder %s134, %s135
    %p146 = scmp.eq.s32.totalorder %s16, 0
    %p147 = por %p145, %p146
    %p148 = scmp.ne.s32.totalorder %s134, %s135
    %p149 = scmp.eq.s32.totalorder %s17, 1
    %p150 = por %p148, %p149
    %p152 = scmp.ne.s32.totalorder %s135, %s151
    %p153 = scmp.eq.s32.totalorder %s17, 0
    %p154 = por %p152, %p153
    %p155 = scmp.le.s32.totalorder 1, %s11
    %p156 = scmp.lt.s32.totalorder %s11, 3
    %p157 = pnand %p155, %p156
    %p158 = pneg %p157
    // Predicated region
    $region9: #{pruned_mlp_forward.1} parent=5 // pred_check
      _
    $region10: #{pruned_mlp_forward.1} parent=5 // pred_check_branch
      %160 = sbr.rel (%p157) target = $region12
    $region11: #{pruned_mlp_forward.1} parent=5 // pred_region
      %s161 = ssub.s32 %s11, 1
      // Predicated region
      $region13: #{pruned_mlp_forward.1} parent=11 // pred_check
        %p162 = pneg %p58
      $region14: #{pruned_mlp_forward.1} parent=11 // pred_check_branch
        %164 = sbr.rel (%p162) target = $region16
      $region15: #{pruned_mlp_forward.1} parent=11 // pred_region
        _
      $region16: #{pruned_mlp_forward.1} parent=11 // pred_fallthru
        _
      // Predicated region
      $region17: #{pruned_mlp_forward.1} parent=11 // pred_check
        %p165 = pneg %p79
      $region18: #{pruned_mlp_forward.1} parent=11 // pred_check_branch
        %167 = sbr.rel (%p165) target = $region20
      $region19: #{pruned_mlp_forward.1} parent=11 // pred_region
        _
      $region20: #{pruned_mlp_forward.1} parent=11 // pred_fallthru
        _
      // Predicated region
      $region21: #{pruned_mlp_forward.1} parent=11 // pred_check
        %p168 = pneg %p100
      $region22: #{pruned_mlp_forward.1} parent=11 // pred_check_branch
        %170 = sbr.rel (%p168) target = $region24
      $region23: #{pruned_mlp_forward.1} parent=11 // pred_region
        _
      $region24: #{pruned_mlp_forward.1} parent=11 // pred_fallthru
        _
      // Predicated region
      $region25: #{pruned_mlp_forward.1} parent=11 // pred_check
        %p171 = pneg %p121
      $region26: #{pruned_mlp_forward.1} parent=11 // pred_check_branch
        %173 = sbr.rel (%p171) target = $region28
      $region27: #{pruned_mlp_forward.1} parent=11 // pred_region
        _
      $region28: #{pruned_mlp_forward.1} parent=11 // pred_fallthru
        _
    $region12: #{pruned_mlp_forward.1} parent=5 // pred_fallthru
      _
    %p174 = scmp.lt.s32.totalorder %s11, 2
    // Predicated region
    $region29: #{pruned_mlp_forward.1} parent=5 // pred_check
      %p175 = pneg %p174
    $region30: #{pruned_mlp_forward.1} parent=5 // pred_check_branch
      %177 = sbr.rel (%p175) target = $region32
    $region31: #{pruned_mlp_forward.1} parent=5 // pred_region
      // Predicated region
      $region33: #{pruned_mlp_forward.1} parent=31 // pred_check
        %p178 = pneg %p31
      $region34: #{pruned_mlp_forward.1} parent=31 // pred_check_branch
        %180 = sbr.rel (%p178) target = $region36
      $region35: #{pruned_mlp_forward.1} parent=31 // pred_region
        %s181 = smul.u32 4, %s11
        %p182 = scmp.lt.s32.totalorder %s181, 7
        %s183 = scalar_select %p182, %s181, 7
        %s184 = smul.addr %s183, 8
        %s185 = scalar_lea.vmem %s0, %s184
        %s186 = smul.u32 4, %s11
      $region36: #{pruned_mlp_forward.1} parent=31 // pred_fallthru
        _
    $region32: #{pruned_mlp_forward.1} parent=5 // pred_fallthru
      _
    %p187 = scmp.le.s32.totalorder 1, %s11
    %p188 = scmp.lt.s32.totalorder %s11, 3
    %p189 = pnand %p187, %p188
    %p190 = pneg %p189
    // Predicated region
    $region37: #{pruned_mlp_forward.1} parent=5 // pred_check
      _
    $region38: #{pruned_mlp_forward.1} parent=5 // pred_check_branch
      %192 = sbr.rel (%p189) target = $region40
    $region39: #{pruned_mlp_forward.1} parent=5 // pred_region
      %s193 = ssub.s32 %s11, 1
      %s194 = smul.u32 4, %s16
      %p195 = scmp.lt.s32.totalorder %s194, 7
      %s196 = scalar_select %p195, %s194, 7
      %s197 = smul.addr %s196, 8
      %s198 = scalar_lea.vmem %s0, %s197
      %p199 = pneg %p37
      %p200 = pneg %p34
      %p201 = pneg %p58
      %p202 = pneg %p55
      %p203 = pneg %p79
      %p204 = pneg %p76
      %p205 = pneg %p100
      %p206 = pneg %p97
      %p207 = pneg %p121
      %p208 = pneg %p118
      %p209 = pneg %p147
      %p210 = pneg %p144
      %s211 = smul.u32 4, %s16
      %p212 = scmp.lt.s32.totalorder %s211, 7
      %s213 = scalar_select %p212, %s211, 7
      %s214 = smul.addr %s213, 8
      %s215 = scalar_lea.vmem %s5, %s214
      %s216 = smul.u32 4, %s16
      %p217 = scmp.lt.s32.totalorder %s216, 7
      %s218 = scalar_select %p217, %s216, 7
      %s219 = smul.addr %s218, 8
      %s220 = scalar_lea.vmem %s0, %s219
      %s221 = smul.u32 4, %s16
      %s222 = smul.u32 4, %s16
      %p223 = scmp.lt.s32.totalorder %s222, 7
      %s224 = scalar_select %p223, %s222, 7
      %s225 = smul.addr %s224, 8
      %s226 = scalar_lea.vmem %s5, %s225
      %s227 = smul.u32 4, %s16
      %v228 = vld [vmem:[%s1] sm:$0xff]
      %v229 = vld [vmem:[%s1 + $0x8] sm:$0xff]
      %v230 = vld [vmem:[%s1 + $0x10] sm:$0xff]
      %v231 = vld [vmem:[%s1 + $0x18] sm:$0xff]
      %v232 = vand.u32 2147483647, %v228
      %v233 = vand.u32 2147483647, %v229
      %v234 = vand.u32 2147483647, %v230
      %v235 = vand.u32 2147483647, %v231
      %vm236 = vcmp.gt.f32.partialorder %v232, 0.1
      %vm237 = vcmp.gt.f32.partialorder %v233, 0.1
      %vm238 = vcmp.gt.f32.partialorder %v234, 0.1
      %vm239 = vcmp.gt.f32.partialorder %v235, 0.1
      %v240 = vsel %vm236, %v228, 0.0
      %v241 = vsel %vm237, %v229, 0.0
      %v242 = vsel %vm238, %v230, 0.0
      %v243 = vsel %vm239, %v231, 0.0
      %v244 = vld [vmem:[%s3] sm:$0xff]
      %v245 = vld [vmem:[%s3 + $0x8] sm:$0xff]
      %v246 = vld [vmem:[%s3 + $0x10] sm:$0xff]
      %v247 = vld [vmem:[%s3 + $0x18] sm:$0xff]
      %v248 = vld [vmem:[%s3 + $0x20] sm:$0xff]
      %v249 = vld [vmem:[%s3 + $0x28] sm:$0xff]
      %v250 = vld [vmem:[%s3 + $0x30] sm:$0xff]
      %v251 = vld [vmem:[%s3 + $0x38] sm:$0xff]
      %v252 = vand.u32 2147483647, %v244
      %v253 = vand.u32 2147483647, %v245
      %v254 = vand.u32 2147483647, %v246
      %v255 = vand.u32 2147483647, %v247
      %v256 = vand.u32 2147483647, %v248
      %v257 = vand.u32 2147483647, %v249
      %v258 = vand.u32 2147483647, %v250
      %v259 = vand.u32 2147483647, %v251
      %vm260 = vcmp.gt.f32.partialorder %v252, 0.1
      %vm261 = vcmp.gt.f32.partialorder %v253, 0.1
      %vm262 = vcmp.gt.f32.partialorder %v254, 0.1
      %vm263 = vcmp.gt.f32.partialorder %v255, 0.1
      %vm264 = vcmp.gt.f32.partialorder %v256, 0.1
      %vm265 = vcmp.gt.f32.partialorder %v257, 0.1
      %vm266 = vcmp.gt.f32.partialorder %v258, 0.1
      %vm267 = vcmp.gt.f32.partialorder %v259, 0.1
      %v268 = vsel %vm260, %v244, 0.0
      %v269 = vsel %vm261, %v245, 0.0
      %v270 = vsel %vm262, %v246, 0.0
      %v271 = vsel %vm263, %v247, 0.0
      %v272 = vsel %vm264, %v248, 0.0
      %v273 = vsel %vm265, %v249, 0.0
      %v274 = vsel %vm266, %v250, 0.0
      %v275 = vsel %vm267, %v251, 0.0
      %v276 = vld [vmem:[%s220] sm:$0xff]
      %v277 = vld [vmem:[%s220 + $0x8] sm:$0xff]
      %v278 = vld [vmem:[%s220 + $0x10] sm:$0xff]
      %v279 = vld [vmem:[%s220 + $0x18] sm:$0xff]
      %v280 = vld [vmem:[%s2] sm:$0x1]
      %v282 = vlaneseq
      %v283 = vshrl.u32 %v282, 7
      %v284 = vsub.s32 0, %v283
      %v285 = vrot.slane %v280, %v284
      %vm287 = vcmask 261120
      %v289 = vsel %vm287, %v276, 0
      %v292 = vsel %vm287, %v277, 0
      %v295 = vsel %vm287, %v278, 0
      %v298 = vsel %vm287, %v279, 0
      %300 = vmatprep.subr.mxu0 0.0
      %301 = vmatpush1.msra.mxu0 %v240
      %302 = vmatprep.subr.mxu0 0.0
      %303 = vmatpush1.msra.mxu0 %v241
      %304 = vmatprep.subr.mxu0 0.0
      %305 = vmatpush1.msra.mxu0 %v242
      %306 = vmatprep.subr.mxu0 0.0
      %307 = vmatpush1.msra.mxu0 %v243
      %308 = vmatprep.subr.mxu0 0.0
      %309 = vmatpush1.msra.mxu0 0.0
      %310 = vmatprep.subr.mxu0 0.0
      %311 = vmatpush1.msra.mxu0 0.0
      %312 = vmatprep.subr.mxu0 0.0
      %313 = vmatpush1.msra.mxu0 0.0
      %314 = vmatprep.subr.mxu0 0.0
      %315 = vmatpush1.msra.mxu0 0.0
      %316 = vmatprep.subr.mxu0 0.0
      %317 = vmatpush1.msra.mxu0 0.0
      %318 = vmatprep.subr.mxu0 0.0
      %319 = vmatpush1.msra.mxu0 0.0
      %320 = vmatprep.subr.mxu0 0.0
      %321 = vmatpush1.msra.mxu0 0.0
      %322 = vmatprep.subr.mxu0 0.0
      %323 = vmatpush1.msra.mxu0 0.0
      %324 = vmatprep.subr.mxu0 0.0
      %325 = vmatpush1.msra.mxu0 0.0
      %326 = vmatprep.subr.mxu0 0.0
      %327 = vmatpush1.msra.mxu0 0.0
      %328 = vmatprep.subr.mxu0 0.0
      %329 = vmatpush1.msra.mxu0 0.0
      %330 = vmatprep.subr.mxu0 0.0
      %331 = vmatpush1.msra.mxu0 0.0
      %332 = vmatprep.subr.mxu0 0.0
      %333 = vmatpush1.msra.mxu0 0.0
      %334 = vmatprep.subr.mxu0 0.0
      %335 = vmatpush1.msra.mxu0 0.0
      %336 = vmatprep.subr.mxu0 0.0
      %337 = vmatpush1.msra.mxu0 0.0
      %338 = vmatprep.subr.mxu0 0.0
      %339 = vmatpush1.msra.mxu0 0.0
      %340 = vmatprep.subr.mxu0 0.0
      %341 = vmatpush1.msra.mxu0 0.0
      %342 = vmatprep.subr.mxu0 0.0
      %343 = vmatpush1.msra.mxu0 0.0
      %344 = vmatprep.subr.mxu0 0.0
      %345 = vmatpush1.msra.mxu0 0.0
      %346 = vmatprep.subr.mxu0 0.0
      %347 = vmatpush1.msra.mxu0 0.0
      %348 = vmatprep.subr.mxu0 0.0
      %349 = vmatpush1.msra.mxu0 0.0
      %350 = vmatprep.subr.mxu0 0.0
      %351 = vmatpush1.msra.mxu0 0.0
      %352 = vmatprep.subr.mxu0 0.0
      %353 = vmatpush1.msra.mxu0 0.0
      %354 = vmatprep.subr.mxu0 0.0
      %355 = vmatpush1.msra.mxu0 0.0
      %356 = vmatprep.subr.mxu0 0.0
      %357 = vmatpush1.msra.mxu0 0.0
      %358 = vmatprep.subr.mxu0 0.0
      %359 = vmatpush1.msra.mxu0 0.0
      %360 = vmatprep.subr.mxu0 0.0
      %361 = vmatpush1.msra.mxu0 0.0
      %362 = vmatprep.subr.mxu0 0.0
      %363 = vmatpush1.msra.mxu0 0.0
      %364 = vmatprep.mubr.f32.mxu0 0.0
      %365 = vmatmul.mubr.f32.gmra.mrb[0].mxu0 %v289
      %v366 = vpop.f32.mrb[0].mxu0
      %v367 = vadd.f32 %v285, %v366
      %v368 = vpop.f32.mrb[0].mxu0
      %369 = vmatprep.mubr.f32.mxu0 0.0
      %370 = vmatmul.mubr.f32.gmra.mrb[0].mxu0 %v292
      %v371 = vpop.f32.mrb[0].mxu0
      %v372 = vadd.f32 %v285, %v371
      %v373 = vpop.f32.mrb[0].mxu0
      %374 = vmatprep.mubr.f32.mxu0 0.0
      %375 = vmatmul.mubr.f32.gmra.mrb[0].mxu0 %v295
      %v376 = vpop.f32.mrb[0].mxu0
      %v377 = vadd.f32 %v285, %v376
      %v378 = vpop.f32.mrb[0].mxu0
      %379 = vmatprep.mubr.f32.mxu0 0.0
      %380 = vmatmul.mubr.f32.gmra.mrb[0].mxu0 %v298
      %v381 = vpop.f32.mrb[0].mxu0
      %v382 = vadd.f32 %v285, %v381
      %v383 = vpop.f32.mrb[0].mxu0
      %384 = vdwg.mxu0
      %v385 = vmax.f32 %v367, 0.0
      %v386 = vmax.f32 %v372, 0.0
      %v387 = vmax.f32 %v377, 0.0
      %v388 = vmax.f32 %v382, 0.0
      %v389 = vld [vmem:[%s4] sm:$0x1]
      %v391 = vlaneseq
      %v392 = vshrl.u32 %v391, 7
      %v393 = vsub.s32 0, %v392
      %v394 = vrot.slane %v389, %v393
      %vm396 = vcmask 523264
      %v398 = vsel %vm396, %v385, 0
      %v401 = vsel %vm396, %v386, 0
      %v404 = vsel %vm396, %v387, 0
      %v407 = vsel %vm396, %v388, 0
      %409 = vmatprep.subr.mxu0 0.0
      %410 = vmatpush1.msra.mxu0 %v268
      %411 = vmatprep.subr.mxu0 0.0
      %412 = vmatpush1.msra.mxu0 %v269
      %413 = vmatprep.subr.mxu0 0.0
      %414 = vmatpush1.msra.mxu0 %v270
      %415 = vmatprep.subr.mxu0 0.0
      %416 = vmatpush1.msra.mxu0 %v271
      %417 = vmatprep.subr.mxu0 0.0
      %418 = vmatpush1.msra.mxu0 %v272
      %419 = vmatprep.subr.mxu0 0.0
      %420 = vmatpush1.msra.mxu0 %v273
      %421 = vmatprep.subr.mxu0 0.0
      %422 = vmatpush1.msra.mxu0 %v274
      %423 = vmatprep.subr.mxu0 0.0
      %424 = vmatpush1.msra.mxu0 %v275
      %425 = vmatprep.subr.mxu0 0.0
      %426 = vmatpush1.msra.mxu0 0.0
      %427 = vmatprep.subr.mxu0 0.0
      %428 = vmatpush1.msra.mxu0 0.0
      %429 = vmatprep.subr.mxu0 0.0
      %430 = vmatpush1.msra.mxu0 0.0
      %431 = vmatprep.subr.mxu0 0.0
      %432 = vmatpush1.msra.mxu0 0.0
      %433 = vmatprep.subr.mxu0 0.0
      %434 = vmatpush1.msra.mxu0 0.0
      %435 = vmatprep.subr.mxu0 0.0
      %436 = vmatpush1.msra.mxu0 0.0
      %437 = vmatprep.subr.mxu0 0.0
      %438 = vmatpush1.msra.mxu0 0.0
      %439 = vmatprep.subr.mxu0 0.0
      %440 = vmatpush1.msra.mxu0 0.0
      %441 = vmatprep.subr.mxu0 0.0
      %442 = vmatpush1.msra.mxu0 0.0
      %443 = vmatprep.subr.mxu0 0.0
      %444 = vmatpush1.msra.mxu0 0.0
      %445 = vmatprep.subr.mxu0 0.0
      %446 = vmatpush1.msra.mxu0 0.0
      %447 = vmatprep.subr.mxu0 0.0
      %448 = vmatpush1.msra.mxu0 0.0
      %449 = vmatprep.subr.mxu0 0.0
      %450 = vmatpush1.msra.mxu0 0.0
      %451 = vmatprep.subr.mxu0 0.0
      %452 = vmatpush1.msra.mxu0 0.0
      %453 = vmatprep.subr.mxu0 0.0
      %454 = vmatpush1.msra.mxu0 0.0
      %455 = vmatprep.subr.mxu0 0.0
      %456 = vmatpush1.msra.mxu0 0.0
      %457 = vmatprep.subr.mxu0 0.0
      %458 = vmatpush1.msra.mxu0 0.0
      %459 = vmatprep.subr.mxu0 0.0
      %460 = vmatpush1.msra.mxu0 0.0
      %461 = vmatprep.subr.mxu0 0.0
      %462 = vmatpush1.msra.mxu0 0.0
      %463 = vmatprep.subr.mxu0 0.0
      %464 = vmatpush1.msra.mxu0 0.0
      %465 = vmatprep.subr.mxu0 0.0
      %466 = vmatpush1.msra.mxu0 0.0
      %467 = vmatprep.subr.mxu0 0.0
      %468 = vmatpush1.msra.mxu0 0.0
      %469 = vmatprep.subr.mxu0 0.0
      %470 = vmatpush1.msra.mxu0 0.0
      %471 = vmatprep.subr.mxu0 0.0
      %472 = vmatpush1.msra.mxu0 0.0
      %473 = vmatprep.mubr.f32.mxu0 0.0
      %474 = vmatmul.mubr.f32.gmra.mrb[0].mxu0 %v398
      %v475 = vpop.f32.mrb[0].mxu0
      %v476 = vadd.f32 %v394, %v475
      %v477 = vpop.f32.mrb[0].mxu0
      %478 = vmatprep.mubr.f32.mxu0 0.0
      %479 = vmatmul.mubr.f32.gmra.mrb[0].mxu0 %v401
      %v480 = vpop.f32.mrb[0].mxu0
      %v481 = vadd.f32 %v394, %v480
      %v482 = vpop.f32.mrb[0].mxu0
      %483 = vmatprep.mubr.f32.mxu0 0.0
      %484 = vmatmul.mubr.f32.gmra.mrb[0].mxu0 %v404
      %v485 = vpop.f32.mrb[0].mxu0
      %v486 = vadd.f32 %v394, %v485
      %v487 = vpop.f32.mrb[0].mxu0
      %488 = vmatprep.mubr.f32.mxu0 0.0
      %489 = vmatmul.mubr.f32.gmra.mrb[0].mxu0 %v407
      %v490 = vpop.f32.mrb[0].mxu0
      %v491 = vadd.f32 %v394, %v490
      %v492 = vpop.f32.mrb[0].mxu0
      %493 = vdwg.mxu0
      %vm494 = vcmask 130048
      %495 = vst.msk [vmem:[%s226] sm:$0xff] %vm494, %v476
      %496 = vst.msk [vmem:[%s226 + $0x8] sm:$0xff] %vm494, %v481
      %497 = vst.msk [vmem:[%s226 + $0x10] sm:$0xff] %vm494, %v486
      %498 = vst.msk [vmem:[%s226 + $0x18] sm:$0xff] %vm494, %v491
      %s499 = smul.u32 4, %s16
      %p500 = scmp.lt.s32.totalorder %s499, 7
      %s501 = scalar_select %p500, %s499, 7
      %s502 = smul.addr %s501, 8
      %s503 = scalar_lea.vmem %s5, %s502
      // Predicated region
      $region41: #{pruned_mlp_forward.1} parent=39 // pred_check
        %p504 = pneg %p144
      $region42: #{pruned_mlp_forward.1} parent=39 // pred_check_branch
        %506 = sbr.rel (%p504) target = $region44
      $region43: #{pruned_mlp_forward.1} parent=39 // pred_region
        %s507 = smul.u32 4, %s16
      $region44: #{pruned_mlp_forward.1} parent=39 // pred_fallthru
        _
    $region40: #{pruned_mlp_forward.1} parent=5 // pred_fallthru
      _
    %p508 = scmp.le.s32.totalorder 2, %s11
    // Predicated region
    $region45: #{pruned_mlp_forward.1} parent=5 // pred_check
      %p509 = pneg %p508
    $region46: #{pruned_mlp_forward.1} parent=5 // pred_check_branch
      %511 = sbr.rel (%p509) target = $region48
    $region47: #{pruned_mlp_forward.1} parent=5 // pred_region
      %s512 = ssub.s32 %s11, 2
      // Predicated region
      $region49: #{pruned_mlp_forward.1} parent=47 // pred_check
        %p513 = pneg %p150
      $region50: #{pruned_mlp_forward.1} parent=47 // pred_check_branch
        %515 = sbr.rel (%p513) target = $region52
      $region51: #{pruned_mlp_forward.1} parent=47 // pred_region
        %s516 = smul.u32 4, %s17
        %p517 = scmp.lt.s32.totalorder %s516, 7
        %s518 = scalar_select %p517, %s516, 7
        %s519 = smul.addr %s518, 8
        %s520 = scalar_lea.vmem %s5, %s519
      $region52: #{pruned_mlp_forward.1} parent=47 // pred_fallthru
        _
    $region48: #{pruned_mlp_forward.1} parent=5 // pred_fallthru
      _
  $region6: #{pruned_mlp_forward.1} parent=0 // loop_footer
    %s15 = sadd.s32 1, %s11
  $region7: #{pruned_mlp_forward.1} parent=0 // loop_footer_branch
    %10 = sbr.rel target = $region3
  $region8: #{pruned_mlp_forward.1} parent=0 // loop_exit
    _

</llo_original>
